<compile_context>
chip_gen: v6e
topology: v6e:2x2x1
jax: 0.10.0
libtpu: 0.0.40
codegen_flags: <defaults>
</compile_context>

<pallas_src>
import functools

import jax
import jax.numpy as jnp
from jax.experimental import pallas as pl
from jax.experimental.pallas import tpu as pltpu


# ----------------------------- Kernel 1: P / Q -----------------------------

def _pq_kernel(params_ref, x_ref, p_ref, q_ref):
    # params_ref (SMEM, (4,)) = [w_query, b_query, w_key, b_key]
    wq = params_ref[0]
    bq = params_ref[1]
    wk = params_ref[2]
    bk = params_ref[3]
    x = x_ref[...]                              # (TR, 128): sublane/lane-dense
    p_ref[...] = jax.nn.sigmoid(x * wq + bq)    # P (flat layout)
    q_ref[...] = jax.nn.sigmoid(x * wk + bk)    # Q (flat layout)


# -------------------------- Kernel 2: Atte slabs ---------------------------

def _atte_kernel(pcol_ref, qrow_ref, a_ref, *, inv_n):
    # pcol_ref : (1, TM, 1)   P row-chunk for this tile (already sigmoid'd)
    # qrow_ref : (1, 1, NL)   full (lane-padded) Q row for this batch
    # a_ref    : (1, TM, NL)  lane-dense output slab
    p_scaled = pcol_ref[0] * inv_n              # fold 1/N into the TM-vector
    # rank-1 outer product on the VPU: (TM,1)*(1,NL) -> (TM,NL).  Deliberately
    # NOT jnp.dot: a K=1 contraction would waste the MXU.  Cast on store so
    # HBM-write bytes match a_ref's dtype (bf16 halves the bound resource).
    a_ref[0] = (p_scaled * qrow_ref[0]).astype(a_ref.dtype)


# ------------------------------ Tiling helpers ------------------------------

_LANE = 128
_PQ_MAX_ROWS = 2048            # 1 MiB f32 per block; x/P/Q double-buffered ~6 MiB


def _round_up(n, m):
    return ((n + m - 1) // m) * m


def _pick_row_tile(n_rows, n_lane, out_itemsize,
                   target_slab_bytes=4 << 20, vmem_budget_bytes=20 << 20):
    """Row tile TM for the (1, TM, n_lane) Atte output slab.

    Constraints (per generation, conservative for v7x's 64 MiB VMEM):
      * double-buffered slab (2*TM*n_lane*out_itemsize) + double-buffered Q row
        (2*n_lane*4) + lane-padded P chunk (2*TM*128*4) fit `vmem_budget_bytes`;
      * one slab targets ~`target_slab_bytes` so the ~0.35 us per-grid-step
        launch overhead is amortized (matters more on v7x's ~3.2 TB/s HBM);
      * TM is a multiple of 8 (sublane) unless it covers all rows (then the
        block equals the full dim, which is always legal).
    """
    if n_rows <= 8:
        return n_rows
    bytes_per_row = n_lane * out_itemsize
    denom = 2 * bytes_per_row + 2 * _LANE * 4           # output slab + P chunk
    tm_cap = max(8, (vmem_budget_bytes - 2 * n_lane * 4) // denom)
    tm_target = max(8, target_slab_bytes // bytes_per_row)
    tm = int(min(tm_cap, tm_target, n_rows))
    if tm >= n_rows:
        return n_rows
    return max(8, (tm // 8) * 8)


# --------------------------------- Wrapper ----------------------------------

def upcor_s_forward(x, params, is_atte=False, atte_dtype=jnp.bfloat16):
    """x: (B, 1, H, W) float32, params: (4,) float32 = [wq, bq, wk, bk].

    Returns (P, Q, Atte) matching torch upCor_s.forward.  `atte_dtype` defaults
    to bf16 for the write-bound Atte kernel; pass jnp.float32 for exact parity
    with the PyTorch module.
    """
    B, C, H, W = x.shape
    assert C == 1, "upCor_s is defined with in_dim = 1"
    N = H * W
    total = B * N

    x = x.astype(jnp.float32)
    smem_spec = pl.BlockSpec(memory_space=pltpu.MemorySpace.SMEM)

    # ---- Kernel 1: P / Q over a sublane/lane-dense flat view ---------------
    total_pad = _round_up(total, _LANE)
    x_flat = x.reshape(-1)
    if total_pad != total:
        x_flat = jnp.pad(x_flat, (0, total_pad - total))
    rows = total_pad // _LANE
    x2d = x_flat.reshape(rows, _LANE)

    if rows <= _PQ_MAX_ROWS:
        tr = rows                       # block == full dims (always legal)
        n_r = 1
    else:
        tr = _PQ_MAX_ROWS               # multiple of 8; last block may be partial
        n_r = pl.cdiv(rows, tr)

    P_flat, Q_flat = pl.pallas_call(
        _pq_kernel,
        out_shape=(
            jax.ShapeDtypeStruct((rows, _LANE), jnp.float32),
            jax.ShapeDtypeStruct((rows, _LANE), jnp.float32),
        ),
        grid_spec=pltpu.PrefetchScalarGridSpec(
            num_scalar_prefetch=0,
            grid=(n_r,),
            in_specs=[smem_spec,
                      pl.BlockSpec((tr, _LANE), lambda i: (i, 0))],
            out_specs=[pl.BlockSpec((tr, _LANE), lambda i: (i, 0)),
                       pl.BlockSpec((tr, _LANE), lambda i: (i, 0))],
        ),
        compiler_params=pltpu.CompilerParams(
            dimension_semantics=("parallel",)),
    )(params, x2d)

    # Wrapper-side layout plumbing (free contiguous reshapes; tiny slice when
    # padding was needed).  torch: P = sigmoid(qconv(x)).view(B,-1,N).permute(0,2,1)
    p_lin = P_flat.reshape(-1)
    q_lin = Q_flat.reshape(-1)
    if total_pad != total:
        p_lin = p_lin[:total]
        q_lin = q_lin[:total]
    P = p_lin.reshape(B, N, 1)
    Q = q_lin.reshape(B, 1, N)

    if not is_atte:
        return P, Q, []                 # matches torch: Atte = []

    # ---- Kernel 2: Atte = bmm(P, Q) / N, tiled as (1, TM, NL) row slabs -----
    out_itemsize = jnp.dtype(atte_dtype).itemsize
    N_lane = _round_up(N, _LANE)        # lane-dense output: unmasked vst only
    Q_k2 = Q if N_lane == N else jnp.pad(Q, ((0, 0), (0, 0), (0, N_lane - N)))

    TM = _pick_row_tile(N, N_lane, out_itemsize)
    n_m = pl.cdiv(N, TM)                # partial last row-block handled by Pallas

    cost = pl.CostEstimate(
        flops=2 * B * N * N_lane,                      # scale + outer-product mul
        transcendentals=0,
        bytes_accessed=B * N * N_lane * out_itemsize + B * (N + N_lane) * 4,
    )

    Atte = pl.pallas_call(
        functools.partial(_atte_kernel, inv_n=1.0 / N),
        out_shape=jax.ShapeDtypeStruct((B, N, N_lane), atte_dtype),
        grid_spec=pltpu.PrefetchScalarGridSpec(
            num_scalar_prefetch=0,
            # B OUTER, m INNER: Q's block index (b,0,0) is constant across the
            # inner m axis, so Pallas skips re-fetching the Q row between
            # consecutive steps.  Do NOT swap these axes.
            grid=(B, n_m),
            in_specs=[
                # tiny (1, TM, 1) P chunk per step -> no in-kernel transpose
                pl.BlockSpec((1, TM, 1), lambda b, m: (b, m, 0)),
                # full (lane-padded) Q row per batch
                pl.BlockSpec((1, 1, N_lane), lambda b, m: (b, 0, 0)),
            ],
            out_specs=pl.BlockSpec((1, TM, N_lane), lambda b, m: (b, m, 0)),
        ),
        compiler_params=pltpu.CompilerParams(
            dimension_semantics=("parallel", "parallel"),
            vmem_limit_bytes=32 << 20),
        cost_estimate=cost,
    )(P, Q_k2)

    if N_lane != N:
        # Slice off the lane padding (costs one extra pass over Atte; only for
        # shapes where H*W is not a multiple of 128).
        Atte = Atte[:, :, :N]

    return P, Q, Atte


# ----------------------------------- Test -----------------------------------

def _reference(x, params):
    B, C, H, W = x.shape
    N = H * W
    xf = x.reshape(B, 1, N)
    P_ref = jnp.transpose(jax.nn.sigmoid(xf * params[0] + params[1]), (0, 2, 1))
    Q_ref = jax.nn.sigmoid(xf * params[2] + params[3])
    A_ref = jnp.einsum("bik,bkj->bij", P_ref, Q_ref) / N
    return P_ref, Q_ref, A_ref


if __name__ == "__main__":
    key = jax.random.PRNGKey(0)
    B, C, H, W = 2, 1, 16, 16
    x = jax.random.normal(key, (B, C, H, W), dtype=jnp.float32)

    # Deterministic 1x1-conv parameters (in_dim=1 -> scalar weight + bias each).
    # [w_query, b_query, w_key, b_key]
    params = jnp.array([0.7, -0.1, -0.4, 0.25], dtype=jnp.float32)

    N = H * W
    P_ref, Q_ref, A_ref = _reference(x, params)

    # is_atte=False path
    P0, Q0, A0 = upcor_s_forward(x, params, is_atte=False)
    jax.block_until_ready((P0, Q0))

    # is_atte=True, exact f32 parity with the PyTorch module
    P, Q, Atte_f32 = upcor_s_forward(x, params, is_atte=True,
                                     atte_dtype=jnp.float32)
    jax.block_until_ready((P, Q, Atte_f32))

    # is_atte=True, default bf16 Atte (half the HBM-write bytes on the
    # write-bound Atte kernel)
    _, _, Atte_bf16 = upcor_s_forward(x, params, is_atte=True)
    jax.block_until_ready(Atte_bf16)

    assert P.shape == (B, N, 1) and Q.shape == (B, 1, N)
    assert Atte_f32.shape == (B, N, N) and Atte_f32.dtype == jnp.float32
    assert Atte_bf16.shape == (B, N, N) and Atte_bf16.dtype == jnp.bfloat16
    assert jnp.allclose(P, P_ref, atol=1e-5)
    assert jnp.allclose(Q, Q_ref, atol=1e-5)
    assert jnp.allclose(Atte_f32, A_ref, atol=1e-5)
    assert jnp.allclose(Atte_bf16.astype(jnp.float32), A_ref,
                        rtol=1e-2, atol=1e-5)
    assert jnp.allclose(P0, P_ref, atol=1e-5)
    assert jnp.allclose(Q0, Q_ref, atol=1e-5)
    assert A0 == []

    # Odd-N shape (H*W not a multiple of 128): exercises the padded-lane and
    # padded-flat-view paths.
    H2, W2 = 10, 10
    x2 = jax.random.normal(jax.random.PRNGKey(1), (B, 1, H2, W2),
                           dtype=jnp.float32)
    N2 = H2 * W2
    P2_ref, Q2_ref, A2_ref = _reference(x2, params)
    P2, Q2, Atte2 = upcor_s_forward(x2, params, is_atte=True,
                                    atte_dtype=jnp.float32)
    jax.block_until_ready((P2, Q2, Atte2))
    assert P2.shape == (B, N2, 1) and Q2.shape == (B, 1, N2)
    assert Atte2.shape == (B, N2, N2)
    assert jnp.allclose(P2, P2_ref, atol=1e-5)
    assert jnp.allclose(Q2, Q2_ref, atol=1e-5)
    assert jnp.allclose(Atte2, A2_ref, atol=1e-5)

    print("KERNEL_OK")
</pallas_src>

<mosaic_0001>
module attributes {stable_mosaic.version = 11 : i64} {
  func.func @_pq_kernel(%arg0: i32, %arg1: memref<4xf32, #tpu.memory_space<smem>>, %arg2: memref<4x128xf32, #tpu.memory_space<vmem>>, %arg3: memref<4x128xf32, #tpu.memory_space<vmem>>, %arg4: memref<4x128xf32, #tpu.memory_space<vmem>>) attributes {dimension_semantics = [#tpu.dimension_semantics<parallel>], iteration_bounds = array<i64: 1>, scalar_prefetch = 0 : i64, scratch_operands = 0 : i64, tpu.core_type = #tpu.core_type<tc>, window_params = [{transform_indices = @transform_0, window_bounds = array<i64: 4>}, {transform_indices = @transform_1, window_bounds = array<i64: 4, 128>}, {transform_indices = @transform_2, window_bounds = array<i64: 4, 128>}, {transform_indices = @transform_3, window_bounds = array<i64: 4, 128>}]} {
    %c0 = arith.constant 0 : index
    %0 = memref.load %arg1[%c0] : memref<4xf32, #tpu.memory_space<smem>>
    %c1 = arith.constant 1 : index
    %1 = memref.load %arg1[%c1] : memref<4xf32, #tpu.memory_space<smem>>
    %c2 = arith.constant 2 : index
    %2 = memref.load %arg1[%c2] : memref<4xf32, #tpu.memory_space<smem>>
    %c3 = arith.constant 3 : index
    %3 = memref.load %arg1[%c3] : memref<4xf32, #tpu.memory_space<smem>>
    %c0_0 = arith.constant 0 : index
    %c0_1 = arith.constant 0 : index
    %4 = vector.load %arg2[%c0_0, %c0_1] : memref<4x128xf32, #tpu.memory_space<vmem>>, vector<4x128xf32>
    %5 = vector.broadcast %0 : f32 to vector<4x128xf32>
    %6 = arith.mulf %4, %5 : vector<4x128xf32>
    %7 = vector.broadcast %1 : f32 to vector<4x128xf32>
    %8 = arith.addf %6, %7 : vector<4x128xf32>
    %9 = arith.negf %8 : vector<4x128xf32>
    %10 = math.exp %9 : vector<4x128xf32>
    %cst = arith.constant 1.000000e+00 : f32
    %11 = vector.broadcast %cst : f32 to vector<4x128xf32>
    %12 = arith.addf %11, %10 : vector<4x128xf32>
    %13 = arith.divf %11, %12 : vector<4x128xf32>
    %c0_2 = arith.constant 0 : index
    %c0_3 = arith.constant 0 : index
    %14 = vector.load %arg3[%c0_2, %c0_3] : memref<4x128xf32, #tpu.memory_space<vmem>>, vector<4x128xf32>
    tpu.vector_store %arg3[%c0_2, %c0_3], %13 {strides = array<i32>} : memref<4x128xf32, #tpu.memory_space<vmem>>, vector<4x128xf32>,
    %15 = vector.broadcast %2 : f32 to vector<4x128xf32>
    %16 = arith.mulf %4, %15 : vector<4x128xf32>
    %17 = vector.broadcast %3 : f32 to vector<4x128xf32>
    %18 = arith.addf %16, %17 : vector<4x128xf32>
    %19 = arith.negf %18 : vector<4x128xf32>
    %20 = math.exp %19 : vector<4x128xf32>
    %cst_4 = arith.constant 1.000000e+00 : f32
    %21 = vector.broadcast %cst_4 : f32 to vector<4x128xf32>
    %22 = arith.addf %21, %20 : vector<4x128xf32>
    %23 = arith.divf %21, %22 : vector<4x128xf32>
    %c0_5 = arith.constant 0 : index
    %c0_6 = arith.constant 0 : index
    %24 = vector.load %arg4[%c0_5, %c0_6] : memref<4x128xf32, #tpu.memory_space<vmem>>, vector<4x128xf32>
    tpu.vector_store %arg4[%c0_5, %c0_6], %23 {strides = array<i32>} : memref<4x128xf32, #tpu.memory_space<vmem>>, vector<4x128xf32>,
    return
  }
  func.func @transform_0(%arg0: i32) -> i32 {
    %c0_i32 = arith.constant 0 : i32
    %c0_i32_0 = arith.constant 0 : i32
    return %c0_i32 : i32
  }
  func.func @transform_1(%arg0: i32) -> (i32, i32) {
    %c0_i32 = arith.constant 0 : i32
    %c0_i32_0 = arith.constant 0 : i32
    return %arg0, %c0_i32 : i32, i32
  }
  func.func @transform_2(%arg0: i32) -> (i32, i32) {
    %c0_i32 = arith.constant 0 : i32
    %c0_i32_0 = arith.constant 0 : i32
    return %arg0, %c0_i32 : i32, i32
  }
  func.func @transform_3(%arg0: i32) -> (i32, i32) {
    %c0_i32 = arith.constant 0 : i32
    %c0_i32_0 = arith.constant 0 : i32
    return %arg0, %c0_i32 : i32, i32
  }
}

</mosaic_0001>

<llo_original>
// kernel: tpu_custom_call.1
$region0: #{tpu_custom_call.1}
  #allocation0 [shape = 'u32[]', space=smem, size = 0x4, offset = 0x4, fixed_abs, tag = 'smem constant byte address 0x4 - core index']
  #allocation1 [shape = 'u32[144,128]{1,0:T(1,128)}', space=vmem, size = 0x12000, scoped, tag = 'internal scratch']
  %s0 = inlined_call_operand.hbm [shape: f32[4], index: 0, kind: input, shape index: {}]
  %s1 = inlined_call_operand.hbm [shape: f32[4,128], index: 1, kind: input, shape index: {}]
  %s2 = inlined_call_operand.hbm [shape: f32[4,128], index: 2, kind: output, shape index: {0}]
  %s3 = inlined_call_operand.hbm [shape: f32[4,128], index: 3, kind: output, shape index: {1}]
  %4 = xla_tuple %s2, %s3
  %s5 = sld [smem:[#allocation0]]
  $region34: #{tpu_custom_call.1} parent=0
    _
  %s7 = ssub.s32 1, %s5
  %s8 = scalar_select 0, %s7, %s5
  $region1: #{tpu_custom_call.1} parent=0
    #allocation2 [shape = 'u8[512]{0}', space=smem, size = 0x200, scoped, tag = 'input window, operand 0, single buffered']
    #allocation3 [shape = 's32[1]{0}', space=sflag, size = 0x4, scoped, tag = 'scoped memory for tpu_custom_call.1']
    #allocation4 [shape = 's32[1]{0}', space=sflag, size = 0x4, scoped, tag = 'scoped memory for tpu_custom_call.1']
    #allocation5 [shape = 's32[1]{0}', space=sflag, size = 0x4, scoped, tag = 'scoped memory for tpu_custom_call.1']
    #allocation6 [shape = 'u8[2048]{0}', space=vmem, size = 0x800, scoped, tag = 'input window, operand 1, single buffered']
    #allocation7 [shape = 'u8[2048]{0}', space=vmem, size = 0x800, scoped, tag = 'output window, operand 0, single buffered']
    #allocation8 [shape = 'u8[2048]{0}', space=vmem, size = 0x800, scoped, tag = 'output window, operand 1, single buffered']
    #allocation9 [shape = 's32[1]{0}', space=sflag, size = 0x4, scoped, tag = 'scoped memory for tpu_custom_call.1']
    %9 = vsyncpa [#allocation5], 0
    %10 = vsyncpa [#allocation3], 0
    %11 = vsyncpa [#allocation4], 0
    %12 = vsyncpa [#allocation9], 0
    // Predicated region
    $region2: #{tpu_custom_call.1} parent=1 // pred_check
      _
    $region3: #{tpu_custom_call.1} parent=1 // pred_check_branch
      %14 = sbr.rel (0) target = $region5
    $region4: #{tpu_custom_call.1} parent=1 // pred_region
      %s16 = ssub.s32 16, 16
      %17 = vsyncadd [#allocation5], %s16
      %20 = dma.hbm_to_smem %s0, 16, [#allocation2], [#allocation5]
    $region5: #{tpu_custom_call.1} parent=1 // pred_fallthru
      _
    // Predicated region
    $region6: #{tpu_custom_call.1} parent=1 // pred_check
      _
    $region7: #{tpu_custom_call.1} parent=1 // pred_check_branch
      %22 = sbr.rel (0) target = $region9
    $region8: #{tpu_custom_call.1} parent=1 // pred_region
      %s24 = ssub.s32 64, 64
      %25 = vsyncadd [#allocation3], %s24
      %s27 = sshll.u32 [#allocation6], 4
      %s28 = int_to_ptr.vmem [resolvable:$true] %s27
      %30 = dma.hbm_to_vmem [thread:$0]  %s1, 64, %s28, [#allocation3]
    $region9: #{tpu_custom_call.1} parent=1 // pred_fallthru
      _
    // Predicated region
    $region10: #{tpu_custom_call.1} parent=1 // pred_check
      _
    $region11: #{tpu_custom_call.1} parent=1 // pred_check_branch
      %32 = sbr.rel (0) target = $region13
    $region12: #{tpu_custom_call.1} parent=1 // pred_region
      %33 = dma.done [#allocation5], 16
    $region13: #{tpu_custom_call.1} parent=1 // pred_fallthru
      _
    // Predicated region
    $region14: #{tpu_custom_call.1} parent=1 // pred_check
      _
    $region15: #{tpu_custom_call.1} parent=1 // pred_check_branch
      %35 = sbr.rel (0) target = $region17
    $region16: #{tpu_custom_call.1} parent=1 // pred_region
      %36 = dma.done [#allocation3], 64
    $region17: #{tpu_custom_call.1} parent=1 // pred_fallthru
      _
    %37 = sfence
    %s38 = sld [smem:[#allocation2]]
    %s39 = sld [smem:[#allocation2 + $0x1]]
    %s40 = sld [smem:[#allocation2 + $0x2]]
    %s41 = sld [smem:[#allocation2 + $0x3]]
    %v42 = vld [vmem:[#allocation6] sm:$0xf]
    %v43 = vstv %s38
    %v44 = vmul.f32 %v42, %v43
    %v45 = vstv %s39
    %v46 = vadd.f32 %v44, %v45
    %v47 = vxor.u32 %v46, 2147483648
    %v48 = vmul.f32 %v47, 1.442695
    %v49 = vpow.pop %v48
    %v50 = vadd.f32 %v49, 1.0
    %v51 = vrcp.pop %v50
    %v52 = vmul.f32 1.0, %v51
    %53 = vst [vmem:[#allocation7] sm:$0xf] %v52
    %v54 = vstv %s40
    %v55 = vmul.f32 %v42, %v54
    %v56 = vstv %s41
    %v57 = vadd.f32 %v55, %v56
    %v58 = vxor.u32 %v57, 2147483648
    %v59 = vmul.f32 %v58, 1.442695
    %v60 = vpow.pop %v59
    %v61 = vadd.f32 %v60, 1.0
    %v62 = vrcp.pop %v61
    %v63 = vmul.f32 1.0, %v62
    %64 = vst [vmem:[#allocation8] sm:$0xf] %v63
    // Predicated region
    $region18: #{tpu_custom_call.1} parent=1 // pred_check
      _
    $region19: #{tpu_custom_call.1} parent=1 // pred_check_branch
      %66 = sbr.rel (0) target = $region21
    $region20: #{tpu_custom_call.1} parent=1 // pred_region
      %s68 = ssub.s32 64, 64
      %69 = vsyncadd [#allocation4], %s68
      %s71 = sshll.u32 [#allocation7], 4
      %s72 = int_to_ptr.vmem [resolvable:$true] %s71
      %74 = dma.vmem_to_hbm [thread:$0]  %s72, 64, %s2, [#allocation4]
    $region21: #{tpu_custom_call.1} parent=1 // pred_fallthru
      _
    // Predicated region
    $region22: #{tpu_custom_call.1} parent=1 // pred_check
      _
    $region23: #{tpu_custom_call.1} parent=1 // pred_check_branch
      %76 = sbr.rel (0) target = $region25
    $region24: #{tpu_custom_call.1} parent=1 // pred_region
      %s78 = ssub.s32 64, 64
      %79 = vsyncadd [#allocation9], %s78
      %s81 = sshll.u32 [#allocation8], 4
      %s82 = int_to_ptr.vmem [resolvable:$true] %s81
      %84 = dma.vmem_to_hbm [thread:$0]  %s82, 64, %s3, [#allocation9]
    $region25: #{tpu_custom_call.1} parent=1 // pred_fallthru
      _
    // Predicated region
    $region26: #{tpu_custom_call.1} parent=1 // pred_check
      _
    $region27: #{tpu_custom_call.1} parent=1 // pred_check_branch
      %86 = sbr.rel (0) target = $region29
    $region28: #{tpu_custom_call.1} parent=1 // pred_region
      %87 = dma.done [#allocation4], 64
    $region29: #{tpu_custom_call.1} parent=1 // pred_fallthru
      _
    // Predicated region
    $region30: #{tpu_custom_call.1} parent=1 // pred_check
      _
    $region31: #{tpu_custom_call.1} parent=1 // pred_check_branch
      %89 = sbr.rel (0) target = $region33
    $region32: #{tpu_custom_call.1} parent=1 // pred_region
      %90 = dma.done [#allocation9], 64
    $region33: #{tpu_custom_call.1} parent=1 // pred_fallthru
      _
    %91 = vsyncpa [#allocation3], 1
    %92 = vsyncpa [#allocation4], 1
    %93 = vsyncpa [#allocation9], 1
    %94 = vsyncpa [#allocation5], 1

</llo_original>
